<compile_context>
chip_gen: v6e
topology: v6e:2x2x1
jax: 0.10.0
libtpu: 0.0.40
codegen_flags: <defaults>
</compile_context>

<pallas_src>
import functools

import jax
import jax.numpy as jnp
from jax.experimental import pallas as pl
from jax.experimental.pallas import tpu as pltpu


def _ce_feature_aug_weight_kernel(x_ref, t_ref, w_ref, loss_ref):
    x = x_ref[...].astype(jnp.float32)          # (TB, C) logits
    t = t_ref[...].astype(jnp.float32)          # (TB, C) target distribution
    w = w_ref[...].astype(jnp.float32)          # (TB, 1) per-sample weight

    # Numerically-stable log-sum-exp over the class (lane) axis.
    m = jnp.max(x, axis=1, keepdims=True)                               # (TB, 1)
    shifted = x - m                                                     # (TB, C)
    lse = jnp.log(jnp.sum(jnp.exp(shifted), axis=1, keepdims=True))     # (TB, 1)

    # loss_i = sum_c -t*(shifted - lse) = lse * sum_c(t) - sum_c(t * shifted)
    t_sum = jnp.sum(t, axis=1, keepdims=True)                           # (TB, 1)
    ts_sum = jnp.sum(t * shifted, axis=1, keepdims=True)                # (TB, 1)

    loss_ref[...] = (lse * t_sum - ts_sum) * w                          # (TB, 1)


def _round_up(x, m):
    return ((x + m - 1) // m) * m


def _choose_tile_b(b, c, in_itemsize_x, in_itemsize_t):
    """Pick a batch tile size that keeps double-buffered tiles in VMEM."""
    # Native sublane tiling: 8 rows (f32), 16 (bf16), 32 (int8).
    sub = 8 * max(1, 4 // min(in_itemsize_x, in_itemsize_t))
    # Per batch row: double-buffered input tiles + ~4 f32 (TB, C) temporaries.
    per_row = c * (2 * (in_itemsize_x + in_itemsize_t) + 4 * 4)
    budget = 24 * 1024 * 1024        # conservative: fits v7x's 64 MiB VMEM/TC
    tb = budget // max(per_row, 1)
    tb = max(sub, min(1024, (tb // sub) * sub))
    return min(tb, _round_up(b, sub))


@functools.partial(jax.jit, static_argnames=("reduction", "tile_b"))
def cross_entropy_feature_aug_weight(inputs, targets, weight, reduction=True,
                                     tile_b=None):
    """Pallas implementation of CrossEntropyFeatureAugWeight.forward.

    Args:
      inputs:  (B, num_classes) pre-softmax logits (any float dtype).
      targets: (B, num_classes) target distribution (one-hot or soft labels).
      weight:  (B,) per-sample weights.
      reduction: if True return scalar mean, else per-sample loss (B,).
      tile_b: optional batch-tile override (rounded to the sublane multiple).
    """
    b, c = inputs.shape
    sub = 8 * max(1, 4 // min(inputs.dtype.itemsize, targets.dtype.itemsize))
    if tile_b is None:
        tb = _choose_tile_b(b, c, inputs.dtype.itemsize, targets.dtype.itemsize)
    else:
        tb = _round_up(int(tile_b), sub)

    num_tiles = pl.cdiv(b, tb)
    b_pad = num_tiles * tb
    pad = b_pad - b
    if pad:
        # Padded rows: targets == 0 and weight == 0 -> exactly zero loss.
        inputs = jnp.pad(inputs, ((0, pad), (0, 0)))
        targets = jnp.pad(targets, ((0, pad), (0, 0)))
        weight = jnp.pad(weight, ((0, pad),))
    weight2d = weight.astype(jnp.float32).reshape(b_pad, 1)

    per_sample = pl.pallas_call(
        _ce_feature_aug_weight_kernel,
        out_shape=jax.ShapeDtypeStruct((b_pad, 1), jnp.float32),
        grid=(num_tiles,),
        in_specs=[
            pl.BlockSpec((tb, c), lambda i: (i, 0)),   # logits tile
            pl.BlockSpec((tb, c), lambda i: (i, 0)),   # targets tile
            pl.BlockSpec((tb, 1), lambda i: (i, 0)),   # per-sample weights
        ],
        out_specs=pl.BlockSpec((tb, 1), lambda i: (i, 0)),
        compiler_params=pltpu.CompilerParams(
            dimension_semantics=("parallel",),
            vmem_limit_bytes=48 * 1024 * 1024,
        ),
    )(inputs, targets, weight2d)

    losses = per_sample[:b, 0]
    if reduction:
        # Final mean in plain XLA (keeps the batch grid axis fully parallel).
        return jnp.sum(losses) / jnp.float32(b)
    return losses


def _reference(inputs, targets, weight, reduction=True):
    log_probs = jax.nn.log_softmax(inputs.astype(jnp.float32), axis=1)
    loss = jnp.sum(-targets.astype(jnp.float32) * log_probs, axis=1)
    loss = loss * weight.astype(jnp.float32)
    return jnp.mean(loss) if reduction else loss


if __name__ == "__main__":
    # Small deterministic example: batch=8, num_classes=32 (single tile).
    key = jax.random.PRNGKey(0)
    k_in, k_tgt, k_w = jax.random.split(key, 3)

    B, C = 8, 32
    inputs = jax.random.normal(k_in, (B, C), dtype=jnp.float32)
    raw = jax.random.uniform(k_tgt, (B, C), dtype=jnp.float32)
    targets = raw / jnp.sum(raw, axis=1, keepdims=True)       # soft labels
    weight = jax.random.uniform(k_w, (B,), dtype=jnp.float32) + 0.5

    out = jax.block_until_ready(
        cross_entropy_feature_aug_weight(inputs, targets, weight, reduction=True))
    ref = _reference(inputs, targets, weight, reduction=True)
    assert jnp.allclose(out, ref, rtol=1e-5, atol=1e-5), (out, ref)

    out_vec = jax.block_until_ready(
        cross_entropy_feature_aug_weight(inputs, targets, weight, reduction=False))
    ref_vec = _reference(inputs, targets, weight, reduction=False)
    assert jnp.allclose(out_vec, ref_vec, rtol=1e-5, atol=1e-5)

    # Multi-tile grid + ragged batch tail + narrow (bf16) HBM dtype path.
    B2, C2 = 40, 160
    k2a, k2b, k2c = jax.random.split(jax.random.PRNGKey(1), 3)
    x2 = jax.random.normal(k2a, (B2, C2), dtype=jnp.float32).astype(jnp.bfloat16)
    r2 = jax.random.uniform(k2b, (B2, C2), dtype=jnp.float32)
    t2 = (r2 / jnp.sum(r2, axis=1, keepdims=True)).astype(jnp.bfloat16)
    w2 = jax.random.uniform(k2c, (B2,), dtype=jnp.float32)

    out2 = jax.block_until_ready(
        cross_entropy_feature_aug_weight(x2, t2, w2, reduction=True, tile_b=16))
    ref2 = _reference(x2, t2, w2, reduction=True)
    assert jnp.allclose(out2, ref2, rtol=1e-4, atol=1e-4), (out2, ref2)

    out2_vec = jax.block_until_ready(
        cross_entropy_feature_aug_weight(x2, t2, w2, reduction=False, tile_b=16))
    ref2_vec = _reference(x2, t2, w2, reduction=False)
    assert jnp.allclose(out2_vec, ref2_vec, rtol=1e-4, atol=1e-4)

    print("KERNEL_OK")
</pallas_src>

<mosaic_0001>
module attributes {stable_mosaic.version = 11 : i64} {
  func.func @_ce_feature_aug_weight_kernel(%arg0: i32, %arg1: memref<8x32xf32, #tpu.memory_space<vmem>>, %arg2: memref<8x32xf32, #tpu.memory_space<vmem>>, %arg3: memref<8x1xf32, #tpu.memory_space<vmem>>, %arg4: memref<8x1xf32, #tpu.memory_space<vmem>>) attributes {dimension_semantics = [#tpu.dimension_semantics<parallel>], iteration_bounds = array<i64: 1>, scalar_prefetch = 0 : i64, scratch_operands = 0 : i64, tpu.core_type = #tpu.core_type<tc>, window_params = [{transform_indices = @transform_0, window_bounds = array<i64: 8, 32>}, {transform_indices = @transform_1, window_bounds = array<i64: 8, 32>}, {transform_indices = @transform_2, window_bounds = array<i64: 8, 1>}, {transform_indices = @transform_3, window_bounds = array<i64: 8, 1>}]} {
    %c0 = arith.constant 0 : index
    %c0_0 = arith.constant 0 : index
    %0 = vector.load %arg1[%c0, %c0_0] : memref<8x32xf32, #tpu.memory_space<vmem>>, vector<8x32xf32>
    %c0_1 = arith.constant 0 : index
    %c0_2 = arith.constant 0 : index
    %1 = vector.load %arg2[%c0_1, %c0_2] : memref<8x32xf32, #tpu.memory_space<vmem>>, vector<8x32xf32>
    %c0_3 = arith.constant 0 : index
    %c0_4 = arith.constant 0 : index
    %2 = vector.load %arg3[%c0_3, %c0_4] : memref<8x1xf32, #tpu.memory_space<vmem>>, vector<8x1xf32>
    %cst = arith.constant dense<0xFF800000> : vector<8xf32>
    %3 = vector.multi_reduction <maximumf>, %0, %cst [1] : vector<8x32xf32> to vector<8xf32>
    %4 = vector.shape_cast %3 : vector<8xf32> to vector<8x1xf32>
    %5 = vector.broadcast %4 : vector<8x1xf32> to vector<8x32xf32>
    %6 = arith.subf %0, %5 : vector<8x32xf32>
    %7 = math.exp %6 : vector<8x32xf32>
    %cst_5 = arith.constant dense<0.000000e+00> : vector<8xf32>
    %8 = vector.multi_reduction <add>, %7, %cst_5 [1] : vector<8x32xf32> to vector<8xf32>
    %9 = vector.shape_cast %8 : vector<8xf32> to vector<8x1xf32>
    %10 = math.log %9 : vector<8x1xf32>
    %cst_6 = arith.constant dense<0.000000e+00> : vector<8xf32>
    %11 = vector.multi_reduction <add>, %1, %cst_6 [1] : vector<8x32xf32> to vector<8xf32>
    %12 = vector.shape_cast %11 : vector<8xf32> to vector<8x1xf32>
    %13 = arith.mulf %1, %6 : vector<8x32xf32>
    %cst_7 = arith.constant dense<0.000000e+00> : vector<8xf32>
    %14 = vector.multi_reduction <add>, %13, %cst_7 [1] : vector<8x32xf32> to vector<8xf32>
    %15 = vector.shape_cast %14 : vector<8xf32> to vector<8x1xf32>
    %16 = arith.mulf %10, %12 : vector<8x1xf32>
    %17 = arith.subf %16, %15 : vector<8x1xf32>
    %18 = arith.mulf %17, %2 : vector<8x1xf32>
    %c0_8 = arith.constant 0 : index
    %c0_9 = arith.constant 0 : index
    %19 = vector.load %arg4[%c0_8, %c0_9] : memref<8x1xf32, #tpu.memory_space<vmem>>, vector<8x1xf32>
    tpu.vector_store %arg4[%c0_8, %c0_9], %18 {strides = array<i32>} : memref<8x1xf32, #tpu.memory_space<vmem>>, vector<8x1xf32>,
    return
  }
  func.func @transform_0(%arg0: i32) -> (i32, i32) {
    %c0_i32 = arith.constant 0 : i32
    %c0_i32_0 = arith.constant 0 : i32
    return %arg0, %c0_i32 : i32, i32
  }
  func.func @transform_1(%arg0: i32) -> (i32, i32) {
    %c0_i32 = arith.constant 0 : i32
    %c0_i32_0 = arith.constant 0 : i32
    return %arg0, %c0_i32 : i32, i32
  }
  func.func @transform_2(%arg0: i32) -> (i32, i32) {
    %c0_i32 = arith.constant 0 : i32
    %c0_i32_0 = arith.constant 0 : i32
    return %arg0, %c0_i32 : i32, i32
  }
  func.func @transform_3(%arg0: i32) -> (i32, i32) {
    %c0_i32 = arith.constant 0 : i32
    %c0_i32_0 = arith.constant 0 : i32
    return %arg0, %c0_i32 : i32, i32
  }
}

</mosaic_0001>

<llo_original>
// kernel: cross_entropy_feature_aug_weight.1
$region0: #{cross_entropy_feature_aug_weight.1}
  #allocation0 [shape = 'u32[]', space=smem, size = 0x4, offset = 0x4, fixed_abs, tag = 'smem constant byte address 0x4 - core index']
  #allocation1 [shape = 'u32[144,128]{1,0:T(1,128)}', space=vmem, size = 0x12000, scoped, tag = 'internal scratch']
  %s0 = inlined_call_operand.vmem [shape: f32[8,32], index: 0, kind: input, shape index: {}]
  %s1 = inlined_call_operand.hbm [shape: f32[8,32], index: 1, kind: input, shape index: {}]
  %s2 = inlined_call_operand.vmem [shape: f32[8,1], index: 2, kind: input, shape index: {}]
  %s3 = inlined_call_operand.vmem [shape: f32[8,1], index: 3, kind: output, shape index: {}]
  %s4 = sld [smem:[#allocation0]]
  $region26: #{cross_entropy_feature_aug_weight.1} parent=0
    _
  %s6 = ssub.s32 1, %s4
  %s7 = scalar_select 0, %s6, %s4
  $region1: #{cross_entropy_feature_aug_weight.1} parent=0
    #allocation2 [shape = 'u8[4096]{0}', space=vmem, size = 0x1000, scoped, tag = 'input window, operand 1, single buffered']
    #allocation3 [shape = 's32[1]{0}', space=sflag, size = 0x4, scoped, tag = 'scoped memory for cross_entropy_feature_aug_weight.1']
    %8 = vsyncpa [#allocation3], 0
    // Predicated region
    $region2: #{cross_entropy_feature_aug_weight.1} parent=1 // pred_check
      _
    $region3: #{cross_entropy_feature_aug_weight.1} parent=1 // pred_check_branch
      %10 = sbr.rel (0) target = $region5
    $region4: #{cross_entropy_feature_aug_weight.1} parent=1 // pred_region
      _
    $region5: #{cross_entropy_feature_aug_weight.1} parent=1 // pred_fallthru
      _
    // Predicated region
    $region6: #{cross_entropy_feature_aug_weight.1} parent=1 // pred_check
      _
    $region7: #{cross_entropy_feature_aug_weight.1} parent=1 // pred_check_branch
      %12 = sbr.rel (0) target = $region9
    $region8: #{cross_entropy_feature_aug_weight.1} parent=1 // pred_region
      %s14 = ssub.s32 128, 128
      %15 = vsyncadd [#allocation3], %s14
      %s17 = sshll.u32 [#allocation2], 4
      %s18 = int_to_ptr.vmem [resolvable:$true] %s17
      %20 = dma.hbm_to_vmem [thread:$0]  %s1, 128, %s18, [#allocation3]
    $region9: #{cross_entropy_feature_aug_weight.1} parent=1 // pred_fallthru
      _
    // Predicated region
    $region10: #{cross_entropy_feature_aug_weight.1} parent=1 // pred_check
      _
    $region11: #{cross_entropy_feature_aug_weight.1} parent=1 // pred_check_branch
      %22 = sbr.rel (0) target = $region13
    $region12: #{cross_entropy_feature_aug_weight.1} parent=1 // pred_region
      _
    $region13: #{cross_entropy_feature_aug_weight.1} parent=1 // pred_fallthru
      _
    // Predicated region
    $region14: #{cross_entropy_feature_aug_weight.1} parent=1 // pred_check
      _
    $region15: #{cross_entropy_feature_aug_weight.1} parent=1 // pred_check_branch
      %24 = sbr.rel (0) target = $region17
    $region16: #{cross_entropy_feature_aug_weight.1} parent=1 // pred_region
      %25 = dma.done [#allocation3], 128
    $region17: #{cross_entropy_feature_aug_weight.1} parent=1 // pred_fallthru
      _
    %v26 = vld [vmem:[%s0] sm:$0xff]
    %v27 = vld [vmem:[#allocation2] sm:$0xff]
    %v28 = vld [vmem:[%s2] sm:$0xff]
    %vm29 = vcmask 261120
    %v30 = vsel %vm29, %v26, -inf
    %31 = vmax.xlane.f32.xlu0 %v30
    %v32 = vpop.xlane.xlu0 %31
    %v33 = vsub.f32 %v26, %v32
    %v34 = vmul.f32 %v33, 1.442695
    %v35 = vpow.pop %v34
    %v36 = vsel %vm29, %v35, 0.0
    %37 = vadd.xlane.f32.xlu0 %v36
    %v38 = vpop.xlane.xlu0 %37
    %v39 = vlog2.pop %v38
    %v40 = vmul.f32 %v39, 0.6931472
    %v41 = vsel %vm29, %v27, 0.0
    %42 = vadd.xlane.f32.xlu0 %v41
    %v43 = vpop.xlane.xlu0 %42
    %v44 = vmul.f32 %v27, %v33
    %v45 = vsel %vm29, %v44, 0.0
    %46 = vadd.xlane.f32.xlu0 %v45
    %v47 = vpop.xlane.xlu0 %46
    %v48 = vmul.f32 %v40, %v43
    %v49 = vsub.f32 %v48, %v47
    %v50 = vmul.f32 %v49, %v28
    %vm51 = vcmask 7168
    %52 = vst.msk [vmem:[%s3] sm:$0xff] %vm51, %v50
    // Predicated region
    $region18: #{cross_entropy_feature_aug_weight.1} parent=1 // pred_check
      _
    $region19: #{cross_entropy_feature_aug_weight.1} parent=1 // pred_check_branch
      %54 = sbr.rel (0) target = $region21
    $region20: #{cross_entropy_feature_aug_weight.1} parent=1 // pred_region
      _
    $region21: #{cross_entropy_feature_aug_weight.1} parent=1 // pred_fallthru
      _
    // Predicated region
    $region22: #{cross_entropy_feature_aug_weight.1} parent=1 // pred_check
      _
    $region23: #{cross_entropy_feature_aug_weight.1} parent=1 // pred_check_branch
      %56 = sbr.rel (0) target = $region25
    $region24: #{cross_entropy_feature_aug_weight.1} parent=1 // pred_region
      _
    $region25: #{cross_entropy_feature_aug_weight.1} parent=1 // pred_fallthru
      _
    %57 = vsyncpa [#allocation3], 1

</llo_original>
